<compile_context>
chip_gen: v7x
topology: tpu7x:2x2x1
jax: 0.10.0
libtpu: 0.0.40
codegen_flags: <defaults>
</compile_context>

<pallas_src>
import functools

import jax
import jax.numpy as jnp
from jax.experimental import pallas as pl
from jax.experimental.pallas import tpu as pltpu

_EPS = 1e-6
_LANES = 128
_SUBLANES = 8
_TARGET_BLOCK_BYTES = 2 * 1024 * 1024   # per input block per grid step (native dtype)
_VMEM_LIMIT_BYTES = 48 * 1024 * 1024    # < v7x's 64 MiB physical; ample on v5e/v6e


def _num_tensorcores_per_chip():
    """2 on v7x (dual TensorCore), 1 on v5e/v6e.  Defaults to 1 (always correct)."""
    try:
        kind = jax.local_devices()[0].device_kind.lower()
    except Exception:
        return 1
    return 2 if any(tag in kind for tag in ("v7", "7x")) else 1


def _rmse_partial_kernel(x_ref, y_ref, o_ref, *, tile_rows, num_tiles,
                         tiles_per_shard, last_tile_rows, has_duplicates):
    s = pl.program_id(0)   # shard (parallel across TensorCores where available)
    j = pl.program_id(1)   # streaming / reduction step within the shard
    tile_idx = s * tiles_per_shard + j
    last_tile = num_tiles - 1

    @pl.when(j == 0)
    def _():
        o_ref[...] = jnp.zeros_like(o_ref)

    def accum(valid_rows):
        # valid_rows is a trace-time constant; the slice is a zero-cost view.
        d = (x_ref[0:valid_rows, :].astype(jnp.float32)
             - y_ref[0:valid_rows, :].astype(jnp.float32))
        dd = d * d
        full8 = (valid_rows // _SUBLANES) * _SUBLANES
        if full8 > 0:
            # Fold onto a single vreg-shaped (8, 128) partial: pure VPU adds,
            # no cross-lane/XLU work in the loop.
            o_ref[...] += jnp.sum(
                dd[0:full8].reshape(-1, _SUBLANES, _LANES), axis=0)
        rem = valid_rows - full8
        if rem > 0:
            o_ref[0:rem, :] += dd[full8:, :]

    if last_tile_rows == tile_rows:
        # Every real tile is full: unmasked steady state.
        if has_duplicates:
            # Only possible with 2-way sharding and an odd tile count: skip
            # the clamped duplicate tile of the last shard entirely.
            @pl.when(tile_idx < num_tiles)
            def _():
                accum(tile_rows)
        else:
            accum(tile_rows)
    else:
        # Full tiles take the unmasked path; only the (statically known)
        # partial last tile reads a sub-slice.  tile_idx > last_tile
        # (clamped duplicates) falls through both branches and is skipped.
        @pl.when(tile_idx < last_tile)
        def _():
            accum(tile_rows)

        @pl.when(tile_idx == last_tile)
        def _():
            accum(last_tile_rows)


def rmse_loss(x, y):
    """sqrt(mean((x - y)**2) + 1e-6) over all elements, matching nn.MSELoss() default."""
    assert x.shape == y.shape, "x and y must have identical shapes"
    total_n = x.size  # mean divisor = number of real elements

    xf = x.reshape(-1)
    yf = y.reshape(-1)

    # Ragged (<128-element) tail is summed with a tiny plain-JAX expression;
    # no concatenate-based padding copy of the full inputs is ever made.
    n_main = (total_n // _LANES) * _LANES
    if n_main < total_n:
        tail_sum = jnp.sum(
            (xf[n_main:].astype(jnp.float32) - yf[n_main:].astype(jnp.float32)) ** 2)
    else:
        tail_sum = jnp.float32(0.0)

    if n_main == 0:
        mse = tail_sum / jnp.float32(total_n)
        return jnp.sqrt(mse + jnp.float32(_EPS))

    rows = n_main // _LANES
    x2 = xf[:n_main].reshape(rows, _LANES)
    y2 = yf[:n_main].reshape(rows, _LANES)

    # ~2 MiB per input block per step in the native dtype (4096 rows for f32,
    # 8192 for bf16), rounded to a sublane multiple; full-dim block if small.
    itemsize = max(jnp.dtype(x.dtype).itemsize, jnp.dtype(y.dtype).itemsize)
    max_tile_rows = max(
        _SUBLANES,
        (_TARGET_BLOCK_BYTES // (_LANES * itemsize) // _SUBLANES) * _SUBLANES)
    tile_rows = min(max_tile_rows, rows)

    num_tiles = -(-rows // tile_rows)
    num_shards = min(_num_tensorcores_per_chip(), num_tiles)
    tiles_per_shard = -(-num_tiles // num_shards)
    has_duplicates = num_shards * tiles_per_shard > num_tiles
    last_tile = num_tiles - 1
    last_tile_rows = rows - last_tile * tile_rows

    def in_map(s, j):
        t = s * tiles_per_shard + j
        if has_duplicates:
            # Keep the prefetched block in range; the duplicate tile is
            # skipped (never accumulated) inside the kernel.
            t = jnp.minimum(t, last_tile)
        return (t, 0)

    kernel = functools.partial(
        _rmse_partial_kernel,
        tile_rows=tile_rows,
        num_tiles=num_tiles,
        tiles_per_shard=tiles_per_shard,
        last_tile_rows=last_tile_rows,
        has_duplicates=has_duplicates,
    )

    cost = pl.CostEstimate(
        flops=3 * n_main,
        transcendentals=0,
        bytes_accessed=n_main * (jnp.dtype(x.dtype).itemsize
                                 + jnp.dtype(y.dtype).itemsize)
        + num_shards * _SUBLANES * _LANES * 4,
    )

    # TODO(synk): if profiling on v7x shows the second TensorCore idle under
    # plain "parallel", switch the shard axis to pltpu.CORE_PARALLEL.
    partials = pl.pallas_call(
        kernel,
        out_shape=jax.ShapeDtypeStruct((num_shards * _SUBLANES, _LANES), jnp.float32),
        grid_spec=pltpu.PrefetchScalarGridSpec(
            num_scalar_prefetch=0,
            grid=(num_shards, tiles_per_shard),
            in_specs=[
                pl.BlockSpec((tile_rows, _LANES), in_map),
                pl.BlockSpec((tile_rows, _LANES), in_map),
            ],
            out_specs=pl.BlockSpec((_SUBLANES, _LANES), lambda s, j: (s, 0)),
        ),
        compiler_params=pltpu.CompilerParams(
            dimension_semantics=("parallel", "arbitrary"),
            vmem_limit_bytes=_VMEM_LIMIT_BYTES,
        ),
        cost_estimate=cost,
    )(x2, y2)

    # Single tiny cross-shard / cross-lane reduce + sqrt, done once here.
    mse = (jnp.sum(partials) + tail_sum) / jnp.float32(total_n)
    return jnp.sqrt(mse + jnp.float32(_EPS))


if __name__ == "__main__":
    key = jax.random.PRNGKey(0)
    kx, ky = jax.random.split(key)
    shape = (2, 4, 16, 16)  # NCHW, consistent with the PyTorch module's usage
    x = jax.random.normal(kx, shape, dtype=jnp.float32)
    y = jax.random.normal(ky, shape, dtype=jnp.float32)

    loss = rmse_loss(x, y)
    jax.block_until_ready(loss)

    # Reference check in plain JAX.
    ref = jnp.sqrt(jnp.mean((x - y) ** 2) + _EPS)
    assert jnp.allclose(loss, ref, rtol=1e-5, atol=1e-6), (loss, ref)

    print("KERNEL_OK")
</pallas_src>

<mosaic_0001>
module attributes {stable_mosaic.version = 11 : i64} {
  func.func @_rmse_partial_kernel(%arg0: i32, %arg1: i32, %arg2: memref<16x128xf32, #tpu.memory_space<vmem>>, %arg3: memref<16x128xf32, #tpu.memory_space<vmem>>, %arg4: memref<8x128xf32, #tpu.memory_space<vmem>>) attributes {dimension_semantics = [#tpu.dimension_semantics<parallel>, #tpu.dimension_semantics<arbitrary>], iteration_bounds = array<i64: 1, 1>, scalar_prefetch = 0 : i64, scratch_operands = 0 : i64, tpu.core_type = #tpu.core_type<tc>, window_params = [{transform_indices = @transform_0, window_bounds = array<i64: 16, 128>}, {transform_indices = @transform_1, window_bounds = array<i64: 16, 128>}, {transform_indices = @transform_2, window_bounds = array<i64: 8, 128>}]} {
    %c0_i32 = arith.constant 0 : i32
    %0 = arith.cmpi eq, %arg1, %c0_i32 : i32
    %1 = arith.extui %0 : i1 to i32
    %c0_i32_0 = arith.constant 0 : i32
    %2 = arith.cmpi ne, %1, %c0_i32_0 : i32
    scf.if %2 {
      %cst_8 = arith.constant 0.000000e+00 : f32
      %12 = vector.broadcast %cst_8 : f32 to vector<8x128xf32>
      %c0_9 = arith.constant 0 : index
      %c0_10 = arith.constant 0 : index
      %13 = vector.load %arg4[%c0_9, %c0_10] : memref<8x128xf32, #tpu.memory_space<vmem>>, vector<8x128xf32>
      tpu.vector_store %arg4[%c0_9, %c0_10], %12 {strides = array<i32>} : memref<8x128xf32, #tpu.memory_space<vmem>>, vector<8x128xf32>,
    } else {
    }
    %c0 = arith.constant 0 : index
    %c0_1 = arith.constant 0 : index
    %3 = vector.load %arg2[%c0, %c0_1] : memref<16x128xf32, #tpu.memory_space<vmem>>, vector<16x128xf32>
    %c0_2 = arith.constant 0 : index
    %c0_3 = arith.constant 0 : index
    %4 = vector.load %arg3[%c0_2, %c0_3] : memref<16x128xf32, #tpu.memory_space<vmem>>, vector<16x128xf32>
    %5 = arith.subf %3, %4 : vector<16x128xf32>
    %6 = arith.mulf %5, %5 : vector<16x128xf32>
    %c0_4 = arith.constant 0 : index
    %c0_5 = arith.constant 0 : index
    %7 = vector.load %arg4[%c0_4, %c0_5] : memref<8x128xf32, #tpu.memory_space<vmem>>, vector<8x128xf32>
    %8 = vector.shape_cast %6 : vector<16x128xf32> to vector<2x8x128xf32>
    %cst = arith.constant dense<0.000000e+00> : vector<8x128xf32>
    %9 = vector.multi_reduction <add>, %8, %cst [0] : vector<2x8x128xf32> to vector<8x128xf32>
    %10 = arith.addf %7, %9 : vector<8x128xf32>
    %c0_6 = arith.constant 0 : index
    %c0_7 = arith.constant 0 : index
    %11 = vector.load %arg4[%c0_6, %c0_7] : memref<8x128xf32, #tpu.memory_space<vmem>>, vector<8x128xf32>
    tpu.vector_store %arg4[%c0_6, %c0_7], %10 {strides = array<i32>} : memref<8x128xf32, #tpu.memory_space<vmem>>, vector<8x128xf32>,
    return
  }
  func.func @transform_0(%arg0: i32, %arg1: i32) -> (i32, i32) {
    %c1_i32 = arith.constant 1 : i32
    %0 = arith.muli %arg0, %c1_i32 : i32
    %1 = arith.addi %0, %arg1 : i32
    %c0_i32 = arith.constant 0 : i32
    %c0_i32_0 = arith.constant 0 : i32
    return %1, %c0_i32 : i32, i32
  }
  func.func @transform_1(%arg0: i32, %arg1: i32) -> (i32, i32) {
    %c1_i32 = arith.constant 1 : i32
    %0 = arith.muli %arg0, %c1_i32 : i32
    %1 = arith.addi %0, %arg1 : i32
    %c0_i32 = arith.constant 0 : i32
    %c0_i32_0 = arith.constant 0 : i32
    return %1, %c0_i32 : i32, i32
  }
  func.func @transform_2(%arg0: i32, %arg1: i32) -> (i32, i32) {
    %c0_i32 = arith.constant 0 : i32
    %c0_i32_0 = arith.constant 0 : i32
    return %arg0, %c0_i32 : i32, i32
  }
}

</mosaic_0001>

<llo_original>
// kernel: tpu_custom_call.1
$region0: #{tpu_custom_call.1}
  #allocation0 [shape = 'u32[]', space=smem, size = 0x4, offset = 0x4, fixed_abs, tag = 'smem constant byte address 0x4 - core index']
  #allocation1 [shape = 'u32[144,128]{1,0:T(1,128)}', space=vmem, size = 0x12000, scoped, tag = 'internal scratch']
  %s0 = inlined_call_operand.hbm [shape: f32[16,128], index: 0, kind: input, shape index: {}]
  %s1 = inlined_call_operand.hbm [shape: f32[16,128], index: 1, kind: input, shape index: {}]
  %s2 = inlined_call_operand.hbm [shape: f32[8,128], index: 2, kind: output, shape index: {}]
  %s3 = sld [smem:[#allocation0]]
  $region30: #{tpu_custom_call.1} parent=0
    _
  %s5 = ssub.s32 1, %s3
  %s6 = scalar_select 0, %s5, %s3
  $region1: #{tpu_custom_call.1} parent=0
    #allocation2 [shape = 'u8[8192]{0}', space=vmem, size = 0x2000, scoped, tag = 'input window, operand 0, single buffered']
    #allocation3 [shape = 's32[1]{0}', space=sflag, size = 0x4, scoped, tag = 'scoped memory for tpu_custom_call.1']
    #allocation4 [shape = 's32[1]{0}', space=sflag, size = 0x4, scoped, tag = 'scoped memory for tpu_custom_call.1']
    #allocation5 [shape = 'u8[8192]{0}', space=vmem, size = 0x2000, scoped, tag = 'input window, operand 1, single buffered']
    #allocation6 [shape = 's32[1]{0}', space=sflag, size = 0x4, scoped, tag = 'scoped memory for tpu_custom_call.1']
    #allocation7 [shape = 'u8[4096]{0}', space=vmem, size = 0x1000, scoped, tag = 'output window, operand 0, single buffered']
    %7 = vsyncpa [#allocation3], 0
    %8 = vsyncpa [#allocation6], 0
    %9 = vsyncpa [#allocation4], 0
    // Predicated region
    $region2: #{tpu_custom_call.1} parent=1 // pred_check
      _
    $region3: #{tpu_custom_call.1} parent=1 // pred_check_branch
      %11 = sbr.rel (0) target = $region5
    $region4: #{tpu_custom_call.1} parent=1 // pred_region
      %s12 = sadd.s32 0, 0
      %s13 = smul.u32 2, %s12
      %s15 = ssub.s32 256, 256
      %16 = vsyncadd [#allocation3], %s15
      %s17 = smul.addr %s13, 128
      %s18 = scalar_lea.hbm %s0, %s17
      %s19 = sshll.u32 [#allocation2], 4
      %s20 = int_to_ptr.vmem [resolvable:$true] %s19
      %25 = dma.hbm_to_vmem [thread:$0]  %s18, 256, %s20, [#allocation3], 128, 128, 8
    $region5: #{tpu_custom_call.1} parent=1 // pred_fallthru
      _
    // Predicated region
    $region6: #{tpu_custom_call.1} parent=1 // pred_check
      _
    $region7: #{tpu_custom_call.1} parent=1 // pred_check_branch
      %27 = sbr.rel (0) target = $region9
    $region8: #{tpu_custom_call.1} parent=1 // pred_region
      %s28 = sadd.s32 0, 0
      %s29 = smul.u32 2, %s28
      %s31 = ssub.s32 256, 256
      %32 = vsyncadd [#allocation6], %s31
      %s33 = smul.addr %s29, 128
      %s34 = scalar_lea.hbm %s1, %s33
      %s35 = sshll.u32 [#allocation5], 4
      %s36 = int_to_ptr.vmem [resolvable:$true] %s35
      %41 = dma.hbm_to_vmem [thread:$0]  %s34, 256, %s36, [#allocation6], 128, 128, 8
    $region9: #{tpu_custom_call.1} parent=1 // pred_fallthru
      _
    // Predicated region
    $region10: #{tpu_custom_call.1} parent=1 // pred_check
      _
    $region11: #{tpu_custom_call.1} parent=1 // pred_check_branch
      %43 = sbr.rel (0) target = $region13
    $region12: #{tpu_custom_call.1} parent=1 // pred_region
      %44 = dma.done [#allocation3], 256
    $region13: #{tpu_custom_call.1} parent=1 // pred_fallthru
      _
    // Predicated region
    $region14: #{tpu_custom_call.1} parent=1 // pred_check
      _
    $region15: #{tpu_custom_call.1} parent=1 // pred_check_branch
      %46 = sbr.rel (0) target = $region17
    $region16: #{tpu_custom_call.1} parent=1 // pred_region
      %47 = dma.done [#allocation6], 256
    $region17: #{tpu_custom_call.1} parent=1 // pred_fallthru
      _
    %s48 = sadd.s32 0, 0
    %s49 = smul.u32 2, %s48
    %s50 = sadd.s32 0, 0
    %s51 = smul.u32 2, %s50
    %p52 = scmp.eq.s32.totalorder 0, 0
    // Predicated region
    $region18: #{tpu_custom_call.1} parent=1 // pred_check
      %p53 = pneg %p52
    $region19: #{tpu_custom_call.1} parent=1 // pred_check_branch
      %55 = sbr.rel (%p53) target = $region21
    $region20: #{tpu_custom_call.1} parent=1 // pred_region
      %56 = vst [vmem:[#allocation7] sm:$0xff] 0.0
    $region21: #{tpu_custom_call.1} parent=1 // pred_fallthru
      _
    %v57 = vld [vmem:[#allocation2] sm:$0xff]
    %v58 = vld [vmem:[#allocation2 + $0x8] sm:$0xff]
    %v59 = vld [vmem:[#allocation5] sm:$0xff]
    %v60 = vld [vmem:[#allocation5 + $0x8] sm:$0xff]
    %v61 = vsub.f32 %v57, %v59
    %v62 = vsub.f32 %v58, %v60
    %v63 = vmul.f32 %v61, %v61
    %v64 = vmul.f32 %v62, %v62
    %v65 = vld [vmem:[#allocation7] sm:$0xff]
    %v66 = vadd.f32 %v63, %v64
    %v67 = vadd.f32 %v65, %v66
    %68 = vst [vmem:[#allocation7] sm:$0xff] %v67
    // Predicated region
    $region22: #{tpu_custom_call.1} parent=1 // pred_check
      _
    $region23: #{tpu_custom_call.1} parent=1 // pred_check_branch
      %70 = sbr.rel (0) target = $region25
    $region24: #{tpu_custom_call.1} parent=1 // pred_region
      %s72 = ssub.s32 128, 128
      %73 = vsyncadd [#allocation4], %s72
      %s75 = sshll.u32 [#allocation7], 4
      %s76 = int_to_ptr.vmem [resolvable:$true] %s75
      %78 = dma.vmem_to_hbm [thread:$0]  %s76, 128, %s2, [#allocation4]
    $region25: #{tpu_custom_call.1} parent=1 // pred_fallthru
      _
    // Predicated region
    $region26: #{tpu_custom_call.1} parent=1 // pred_check
      _
    $region27: #{tpu_custom_call.1} parent=1 // pred_check_branch
      %80 = sbr.rel (0) target = $region29
    $region28: #{tpu_custom_call.1} parent=1 // pred_region
      %81 = dma.done [#allocation4], 128
    $region29: #{tpu_custom_call.1} parent=1 // pred_fallthru
      _
    %82 = vsyncpa [#allocation3], 1
    %83 = vsyncpa [#allocation6], 1
    %84 = vsyncpa [#allocation4], 1

</llo_original>
